<compile_context>
chip_gen: v7x
topology: tpu7x:2x2x1
jax: 0.10.0
libtpu: 0.0.40
codegen_flags: <defaults>
</compile_context>

<pallas_src>
import functools

import jax
import jax.numpy as jnp
from jax.experimental import pallas as pl
from jax.experimental.pallas import tpu as pltpu


def _round_up(v, m):
    return ((v + m - 1) // m) * m


def _fta_kernel(x_ref, e_ref, c_ref, o_ref, *, half_delta, eta):
    # x_ref: (tm, D) input rows, e_ref: (D, D*K) one-hot expansion,
    # c_ref: (1, D*K) tiled centers + delta/2, o_ref: (tm, D*K) output tile.
    x = x_ref[...].astype(jnp.float32)
    # One-hot lane expansion on the (otherwise idle) MXU: xr[:, d*K+k] = x[:, d].
    # Exact under HIGHEST precision since E is 0/1-valued.
    xr = jnp.dot(
        x, e_ref[...],
        preferred_element_type=jnp.float32,
        precision=jax.lax.Precision.HIGHEST)
    # c_ref holds c[k] + delta/2 at lane d*K + k; sublane-broadcasts over rows.
    t = jnp.abs(xr - c_ref[...])
    # Fused form of: u = max(t - delta/2, 0); out = where(u <= eta, 1 - u, 0).
    # Valid for delta >= 0 and eta >= 0 (asserted in the wrapper).
    o_ref[...] = jnp.where(
        t <= half_delta + eta,
        jnp.minimum((1.0 + half_delta) - t, 1.0),
        0.0,
    ).astype(o_ref.dtype)


def fta_forward(z, c, delta, eta, *, tm=4096, out_dtype=None):
    """FTA forward: z (..., D) float -> (..., D*K), K = len(c).

    out_dtype=jnp.bfloat16 is the recommended setting when bit-exactness vs the
    f32 reference is not required (halves the dominant HBM write stream).
    """
    delta = float(delta)
    eta = float(eta)
    assert delta >= 0.0, "|z - c'| rewrite of the two clips requires delta >= 0"
    assert eta >= 0.0, "fused branch rewrite requires eta >= 0"

    lead = z.shape[:-1]
    D = z.shape[-1]
    K = int(c.shape[0])
    DK = D * K
    out_dtype = jnp.dtype(z.dtype if out_dtype is None else out_dtype)

    x = z.reshape(-1, D)
    N = x.shape[0]

    # Row tile: as large as possible (target `tm`), but keep >= ~8 grid steps
    # when there are enough rows (v7x: 2 cores x >= 4 iterations each), rounded
    # to the 8-sublane tile.  No padding: the last grid block may be partial
    # and Pallas masks its writeback.
    n8 = _round_up(max(N, 1), 8)
    tm_eff = max(8, min(_round_up(tm, 8), _round_up(pl.cdiv(n8, 8), 8), n8))
    grid = (pl.cdiv(N, tm_eff),)

    # Pre-tiled + pre-shifted centers: lane index d*K + k  ->  c[k] + delta/2.
    c_shift = (jnp.tile(c.astype(jnp.float32), D) + 0.5 * delta).reshape(1, DK)
    # One-hot expansion matrix: E[d, d*K + k] = 1.
    expand = jnp.repeat(jnp.eye(D, dtype=jnp.float32), K, axis=1)

    # Scoped-VMEM budget.  The (tm, D) input tile is lane-padded to 128 in
    # VMEM; include the in-kernel f32 expansion intermediate and the constant
    # blocks.  Only override the default limit when the sweep would approach
    # v5e's 16 MiB default scoped limit; never lower it below 32 MiB.
    in_bytes = jnp.dtype(x.dtype).itemsize
    out_bytes = out_dtype.itemsize
    d_pad = _round_up(D, 128)
    dk_pad = _round_up(DK, 128)
    vmem_need = (
        2 * tm_eff * d_pad * in_bytes          # double-buffered input tiles
        + 2 * tm_eff * dk_pad * out_bytes      # double-buffered output tiles
        + tm_eff * dk_pad * 4                  # f32 expansion intermediate
        + 2 * (_round_up(D, 8) + 8) * dk_pad * 4   # E + c_shift constant blocks
    )
    cp_kwargs = dict(dimension_semantics=("parallel",))
    if vmem_need > (12 << 20):
        cp_kwargs["vmem_limit_bytes"] = int(
            min(max(vmem_need + (8 << 20), 32 << 20), 48 << 20))

    out = pl.pallas_call(
        functools.partial(_fta_kernel, half_delta=0.5 * delta, eta=eta),
        out_shape=jax.ShapeDtypeStruct((N, DK), out_dtype),
        grid_spec=pltpu.PrefetchScalarGridSpec(
            num_scalar_prefetch=0,
            grid=grid,
            in_specs=[
                pl.BlockSpec((tm_eff, D), lambda i: (i, 0)),
                pl.BlockSpec((D, DK), lambda i: (0, 0)),    # constant: DMA'd once
                pl.BlockSpec((1, DK), lambda i: (0, 0)),    # constant: DMA'd once
            ],
            out_specs=pl.BlockSpec((tm_eff, DK), lambda i: (i, 0)),
        ),
        compiler_params=pltpu.CompilerParams(**cp_kwargs),
    )(x, expand, c_shift)

    return out.reshape(*lead, DK)


def fta_reference(z, c, delta, eta):
    """Pure-JAX reference mirroring the PyTorch module exactly."""
    z_exp = z[..., None]                                          # (..., D, 1)
    u = jnp.maximum(c - z_exp, 0.0) + jnp.maximum(z_exp - delta - c, 0.0)
    fuzzy = (u <= eta) * u + (u > eta)
    out = 1.0 - fuzzy                                             # (..., D, K)
    return out.reshape(*out.shape[:-2], -1)                       # (..., D*K)


if __name__ == "__main__":
    # FTA parameters (deterministic, defined in-script).
    lower_limit, upper_limit, delta, eta = -2.0, 2.0, 0.25, 0.25
    c = jnp.arange(lower_limit, upper_limit, delta, dtype=jnp.float32)  # K = 16

    # Small example input: batch=2, seq=4, features=16 -> output (2, 4, 256).
    z_small = jax.random.normal(jax.random.PRNGKey(0), (2, 4, 16), dtype=jnp.float32)
    out_small = jax.block_until_ready(fta_forward(z_small, c, delta, eta))
    ref_small = fta_reference(z_small, c, delta, eta)
    assert out_small.shape == ref_small.shape, (out_small.shape, ref_small.shape)
    assert jnp.allclose(out_small, ref_small, atol=1e-6, rtol=1e-6), "mismatch (small)"

    # Ragged case: multi-step grid + Pallas-masked partial last block
    # (no wrapper-side pad / slice copies).
    z_big = jax.random.normal(jax.random.PRNGKey(1), (4, 37, 16), dtype=jnp.float32)
    out_big = jax.block_until_ready(fta_forward(z_big, c, delta, eta))
    ref_big = fta_reference(z_big, c, delta, eta)
    assert out_big.shape == ref_big.shape, (out_big.shape, ref_big.shape)
    assert jnp.allclose(out_big, ref_big, atol=1e-6, rtol=1e-6), "mismatch (ragged)"

    # Recommended bf16 output: halves the dominant HBM write stream; values in
    # [0, 1] are quantized to ~3 decimal digits (not bit-exact vs f32 reference).
    out_bf16 = jax.block_until_ready(
        fta_forward(z_big, c, delta, eta, out_dtype=jnp.bfloat16))
    assert jnp.allclose(out_bf16.astype(jnp.float32), ref_big, atol=5e-3, rtol=0), \
        "mismatch (bf16)"

    print("KERNEL_OK")
</pallas_src>

<mosaic_0001>
module attributes {stable_mosaic.version = 11 : i64} {
  func.func @_fta_kernel(%arg0: i32, %arg1: memref<8x16xf32, #tpu.memory_space<vmem>>, %arg2: memref<16x256xf32, #tpu.memory_space<vmem>>, %arg3: memref<1x256xf32, #tpu.memory_space<vmem>>, %arg4: memref<8x256xf32, #tpu.memory_space<vmem>>) attributes {dimension_semantics = [#tpu.dimension_semantics<parallel>], iteration_bounds = array<i64: 1>, scalar_prefetch = 0 : i64, scratch_operands = 0 : i64, tpu.core_type = #tpu.core_type<tc>, window_params = [{transform_indices = @transform_0, window_bounds = array<i64: 8, 16>}, {pipeline_mode = #tpu.pipeline_mode<synchronous>, transform_indices = @transform_1, window_bounds = array<i64: 16, 256>}, {pipeline_mode = #tpu.pipeline_mode<synchronous>, transform_indices = @transform_2, window_bounds = array<i64: 1, 256>}, {transform_indices = @transform_3, window_bounds = array<i64: 8, 256>}]} {
    %c0 = arith.constant 0 : index
    %c0_0 = arith.constant 0 : index
    %0 = vector.load %arg1[%c0, %c0_0] : memref<8x16xf32, #tpu.memory_space<vmem>>, vector<8x16xf32>
    %c0_1 = arith.constant 0 : index
    %c0_2 = arith.constant 0 : index
    %1 = vector.load %arg2[%c0_1, %c0_2] : memref<16x256xf32, #tpu.memory_space<vmem>>, vector<16x256xf32>
    %cst = arith.constant dense<0.000000e+00> : vector<8x256xf32>
    %2 = tpu.matmul %0, %1, %cst {dimension_numbers = #tpu.dot_dimension_numbers<[1], [0], [0], [1], [0, 0, 1, 1], [], []>, precision = #tpu.contract_precision<fp32>} : vector<8x16xf32>, vector<16x256xf32>, vector<8x256xf32> -> vector<8x256xf32>
    %c0_3 = arith.constant 0 : index
    %c0_4 = arith.constant 0 : index
    %3 = vector.load %arg3[%c0_3, %c0_4] : memref<1x256xf32, #tpu.memory_space<vmem>>, vector<1x256xf32>
    %4 = vector.broadcast %3 : vector<1x256xf32> to vector<8x256xf32>
    %5 = arith.subf %2, %4 : vector<8x256xf32>
    %6 = math.absf %5 : vector<8x256xf32>
    %cst_5 = arith.constant 3.750000e-01 : f32
    %7 = vector.broadcast %cst_5 : f32 to vector<8x256xf32>
    %8 = arith.cmpf ole, %6, %7 : vector<8x256xf32>
    %cst_6 = arith.constant 1.125000e+00 : f32
    %9 = vector.broadcast %cst_6 : f32 to vector<8x256xf32>
    %10 = arith.subf %9, %6 : vector<8x256xf32>
    %cst_7 = arith.constant 1.000000e+00 : f32
    %11 = vector.broadcast %cst_7 : f32 to vector<8x256xf32>
    %12 = arith.minimumf %10, %11 : vector<8x256xf32>
    %cst_8 = arith.constant 0.000000e+00 : f32
    %13 = vector.broadcast %cst_8 : f32 to vector<8x256xf32>
    %14 = arith.select %8, %12, %13 : vector<8x256xi1>, vector<8x256xf32>
    %c0_9 = arith.constant 0 : index
    %c0_10 = arith.constant 0 : index
    %15 = vector.load %arg4[%c0_9, %c0_10] : memref<8x256xf32, #tpu.memory_space<vmem>>, vector<8x256xf32>
    tpu.vector_store %arg4[%c0_9, %c0_10], %14 {strides = array<i32>} : memref<8x256xf32, #tpu.memory_space<vmem>>, vector<8x256xf32>,
    return
  }
  func.func @transform_0(%arg0: i32) -> (i32, i32) {
    %c0_i32 = arith.constant 0 : i32
    %c0_i32_0 = arith.constant 0 : i32
    return %arg0, %c0_i32 : i32, i32
  }
  func.func @transform_1(%arg0: i32) -> (i32, i32) {
    %c0_i32 = arith.constant 0 : i32
    %c0_i32_0 = arith.constant 0 : i32
    %c0_i32_1 = arith.constant 0 : i32
    return %c0_i32, %c0_i32_0 : i32, i32
  }
  func.func @transform_2(%arg0: i32) -> (i32, i32) {
    %c0_i32 = arith.constant 0 : i32
    %c0_i32_0 = arith.constant 0 : i32
    %c0_i32_1 = arith.constant 0 : i32
    return %c0_i32, %c0_i32_0 : i32, i32
  }
  func.func @transform_3(%arg0: i32) -> (i32, i32) {
    %c0_i32 = arith.constant 0 : i32
    %c0_i32_0 = arith.constant 0 : i32
    return %arg0, %c0_i32 : i32, i32
  }
}

</mosaic_0001>

<llo_original>
// kernel: tpu_custom_call.1
$region0: #{tpu_custom_call.1}
  #allocation0 [shape = 'u32[]', space=smem, size = 0x4, offset = 0x4, fixed_abs, tag = 'smem constant byte address 0x4 - core index']
  #allocation1 [shape = 'u32[144,128]{1,0:T(1,128)}', space=vmem, size = 0x12000, scoped, tag = 'internal scratch']
  %s0 = inlined_call_operand.hbm [shape: f32[8,16], index: 0, kind: input, shape index: {}]
  %s1 = inlined_call_operand.hbm [shape: f32[16,256], index: 1, kind: input, shape index: {}]
  %s2 = inlined_call_operand.vmem [shape: f32[1,256], index: 2, kind: input, shape index: {}]
  %s3 = inlined_call_operand.hbm [shape: f32[8,256], index: 3, kind: output, shape index: {}]
  %s4 = sld [smem:[#allocation0]]
  $region30: #{tpu_custom_call.1} parent=0
    _
  %s6 = ssub.s32 1, %s4
  %s7 = scalar_select 0, %s6, %s4
  $region1: #{tpu_custom_call.1} parent=0
    #allocation2 [shape = 'u8[4096]{0}', space=vmem, size = 0x1000, scoped, tag = 'input window, operand 0, single buffered']
    #allocation3 [shape = 's32[1]{0}', space=sflag, size = 0x4, scoped, tag = 'scoped memory for tpu_custom_call.1']
    #allocation4 [shape = 's32[1]{0}', space=sflag, size = 0x4, scoped, tag = 'scoped memory for tpu_custom_call.1']
    #allocation5 [shape = 'u8[16384]{0}', space=vmem, size = 0x4000, scoped, tag = 'input window, operand 1, single buffered']
    #allocation6 [shape = 's32[1]{0}', space=sflag, size = 0x4, scoped, tag = 'scoped memory for tpu_custom_call.1']
    #allocation7 [shape = 'u8[8192]{0}', space=vmem, size = 0x2000, scoped, tag = 'output window, operand 0, single buffered']
    %8 = vsyncpa [#allocation3], 0
    %9 = vsyncpa [#allocation6], 0
    %10 = vsyncpa [#allocation4], 0
    // Predicated region
    $region2: #{tpu_custom_call.1} parent=1 // pred_check
      _
    $region3: #{tpu_custom_call.1} parent=1 // pred_check_branch
      %12 = sbr.rel (0) target = $region5
    $region4: #{tpu_custom_call.1} parent=1 // pred_region
      %s14 = ssub.s32 128, 128
      %15 = vsyncadd [#allocation3], %s14
      %s17 = sshll.u32 [#allocation2], 4
      %s18 = int_to_ptr.vmem [resolvable:$true] %s17
      %20 = dma.hbm_to_vmem [thread:$0]  %s0, 128, %s18, [#allocation3]
    $region5: #{tpu_custom_call.1} parent=1 // pred_fallthru
      _
    // Predicated region
    $region6: #{tpu_custom_call.1} parent=1 // pred_check
      _
    $region7: #{tpu_custom_call.1} parent=1 // pred_check_branch
      %22 = sbr.rel (0) target = $region9
    $region8: #{tpu_custom_call.1} parent=1 // pred_region
      %s24 = ssub.s32 512, 512
      %25 = vsyncadd [#allocation6], %s24
      %s26 = sshll.u32 [#allocation5], 4
      %s27 = int_to_ptr.vmem [resolvable:$true] %s26
      %32 = dma.hbm_to_vmem [thread:$0]  %s1, 512, %s27, [#allocation6], 256, 256, 16
    $region9: #{tpu_custom_call.1} parent=1 // pred_fallthru
      _
    // Predicated region
    $region10: #{tpu_custom_call.1} parent=1 // pred_check
      _
    $region11: #{tpu_custom_call.1} parent=1 // pred_check_branch
      %34 = sbr.rel (0) target = $region13
    $region12: #{tpu_custom_call.1} parent=1 // pred_region
      _
    $region13: #{tpu_custom_call.1} parent=1 // pred_fallthru
      _
    // Predicated region
    $region14: #{tpu_custom_call.1} parent=1 // pred_check
      _
    $region15: #{tpu_custom_call.1} parent=1 // pred_check_branch
      %36 = sbr.rel (0) target = $region17
    $region16: #{tpu_custom_call.1} parent=1 // pred_region
      %37 = dma.done [#allocation3], 128
    $region17: #{tpu_custom_call.1} parent=1 // pred_fallthru
      _
    // Predicated region
    $region18: #{tpu_custom_call.1} parent=1 // pred_check
      _
    $region19: #{tpu_custom_call.1} parent=1 // pred_check_branch
      %39 = sbr.rel (0) target = $region21
    $region20: #{tpu_custom_call.1} parent=1 // pred_region
      %40 = dma.done [#allocation6], 512
    $region21: #{tpu_custom_call.1} parent=1 // pred_fallthru
      _
    %v41 = vld [vmem:[#allocation2] sm:$0xff]
    %v42 = vld [vmem:[#allocation5] sm:$0xff]
    %v43 = vld [vmem:[#allocation5 + $0x8] sm:$0xff]
    %v44 = vld [vmem:[#allocation5 + $0x10] sm:$0xff]
    %v45 = vld [vmem:[#allocation5 + $0x18] sm:$0xff]
    %vm46 = vcmask 130048
    %v48 = vsel %vm46, %v41, 0
    %v50 = vand.u32 %v43, 4294901760
    %51 = vmatprep.subr.mxu0 %v50
    %v52 = vand.u32 %v42, 4294901760
    %53 = vmatpush1.msra.mxu0 %v52
    %v54 = vand.u32 %v45, 4294901760
    %55 = vmatprep.subr.mxu0 %v54
    %v56 = vand.u32 %v44, 4294901760
    %57 = vmatpush1.msra.mxu0 %v56
    %58 = vmatprep.subr.mxu0 0.0
    %59 = vmatpush1.msra.mxu0 0.0
    %60 = vmatprep.subr.mxu0 0.0
    %61 = vmatpush1.msra.mxu0 0.0
    %62 = vmatprep.subr.mxu0 0.0
    %63 = vmatpush1.msra.mxu0 0.0
    %64 = vmatprep.subr.mxu0 0.0
    %65 = vmatpush1.msra.mxu0 0.0
    %66 = vmatprep.subr.mxu0 0.0
    %67 = vmatpush1.msra.mxu0 0.0
    %68 = vmatprep.subr.mxu0 0.0
    %69 = vmatpush1.msra.mxu0 0.0
    %70 = vmatprep.subr.mxu0 0.0
    %71 = vmatpush1.msra.mxu0 0.0
    %72 = vmatprep.subr.mxu0 0.0
    %73 = vmatpush1.msra.mxu0 0.0
    %74 = vmatprep.subr.mxu0 0.0
    %75 = vmatpush1.msra.mxu0 0.0
    %76 = vmatprep.subr.mxu0 0.0
    %77 = vmatpush1.msra.mxu0 0.0
    %78 = vmatprep.subr.mxu0 0.0
    %79 = vmatpush1.msra.mxu0 0.0
    %80 = vmatprep.subr.mxu0 0.0
    %81 = vmatpush1.msra.mxu0 0.0
    %82 = vmatprep.subr.mxu0 0.0
    %83 = vmatpush1.msra.mxu0 0.0
    %84 = vmatprep.subr.mxu0 0.0
    %85 = vmatpush1.msra.mxu0 0.0
    %86 = vmatprep.subr.mxu0 0.0
    %87 = vmatpush1.msra.mxu0 0.0
    %88 = vmatprep.subr.mxu0 0.0
    %89 = vmatpush1.msra.mxu0 0.0
    %90 = vmatprep.subr.mxu0 0.0
    %91 = vmatpush1.msra.mxu0 0.0
    %92 = vmatprep.subr.mxu0 0.0
    %93 = vmatpush1.msra.mxu0 0.0
    %94 = vmatprep.subr.mxu0 0.0
    %95 = vmatpush1.msra.mxu0 0.0
    %96 = vmatprep.subr.mxu0 0.0
    %97 = vmatpush1.msra.mxu0 0.0
    %98 = vmatprep.subr.mxu0 0.0
    %99 = vmatpush1.msra.mxu0 0.0
    %100 = vmatprep.subr.mxu0 0.0
    %101 = vmatpush1.msra.mxu0 0.0
    %102 = vmatprep.subr.mxu0 0.0
    %103 = vmatpush1.msra.mxu0 0.0
    %104 = vmatprep.subr.mxu0 0.0
    %105 = vmatpush1.msra.mxu0 0.0
    %106 = vmatprep.subr.mxu0 0.0
    %107 = vmatpush1.msra.mxu0 0.0
    %108 = vmatprep.subr.mxu0 0.0
    %109 = vmatpush1.msra.mxu0 0.0
    %110 = vmatprep.subr.mxu0 0.0
    %111 = vmatpush1.msra.mxu0 0.0
    %112 = vmatprep.subr.mxu0 0.0
    %113 = vmatpush1.msra.mxu0 0.0
    %114 = vmatprep.subr.mxu0 0.0
    %115 = vmatpush1.msra.mxu0 0.0
    %116 = vmatprep.subr.mxu0 0.0
    %117 = vmatpush1.msra.mxu0 0.0
    %118 = vmatprep.mubr.f32.mxu0 0.0
    %v119 = vand.u32 %v48, 4294901760
    %v120 = vsub.f32 %v48, %v119
    %v121 = vand.u32 %v120, 4294901760
    %v122 = vsub.f32 %v120, %v121
    %v123 = vand.u32 %v122, 4294901760
    %124 = vmatmul.mubr.f32.gmra.mrb[0].mxu0 %v123
    %v125 = vpop.f32.mrb[0].mxu0
    %v126 = vadd.f32 0.0, %v125
    %v127 = vpop.f32.mrb[0].mxu0
    %v128 = vadd.f32 0.0, %v127
    %129 = vdwg.mxu0
    %v130 = vand.u32 %v43, 4294901760
    %v131 = vsub.f32 %v43, %v130
    %v132 = vand.u32 %v131, 4294901760
    %v133 = vsub.f32 %v131, %v132
    %v134 = vand.u32 %v133, 4294901760
    %135 = vmatprep.subr.mxu0 %v134
    %v136 = vand.u32 %v42, 4294901760
    %v137 = vsub.f32 %v42, %v136
    %v138 = vand.u32 %v137, 4294901760
    %v139 = vsub.f32 %v137, %v138
    %v140 = vand.u32 %v139, 4294901760
    %141 = vmatpush1.msra.mxu0 %v140
    %v142 = vand.u32 %v45, 4294901760
    %v143 = vsub.f32 %v45, %v142
    %v144 = vand.u32 %v143, 4294901760
    %v145 = vsub.f32 %v143, %v144
    %v146 = vand.u32 %v145, 4294901760
    %147 = vmatprep.subr.mxu0 %v146
    %v148 = vand.u32 %v44, 4294901760
    %v149 = vsub.f32 %v44, %v148
    %v150 = vand.u32 %v149, 4294901760
    %v151 = vsub.f32 %v149, %v150
    %v152 = vand.u32 %v151, 4294901760
    %153 = vmatpush1.msra.mxu0 %v152
    %154 = vmatprep.subr.mxu0 0.0
    %155 = vmatpush1.msra.mxu0 0.0
    %156 = vmatprep.subr.mxu0 0.0
    %157 = vmatpush1.msra.mxu0 0.0
    %158 = vmatprep.subr.mxu0 0.0
    %159 = vmatpush1.msra.mxu0 0.0
    %160 = vmatprep.subr.mxu0 0.0
    %161 = vmatpush1.msra.mxu0 0.0
    %162 = vmatprep.subr.mxu0 0.0
    %163 = vmatpush1.msra.mxu0 0.0
    %164 = vmatprep.subr.mxu0 0.0
    %165 = vmatpush1.msra.mxu0 0.0
    %166 = vmatprep.subr.mxu0 0.0
    %167 = vmatpush1.msra.mxu0 0.0
    %168 = vmatprep.subr.mxu0 0.0
    %169 = vmatpush1.msra.mxu0 0.0
    %170 = vmatprep.subr.mxu0 0.0
    %171 = vmatpush1.msra.mxu0 0.0
    %172 = vmatprep.subr.mxu0 0.0
    %173 = vmatpush1.msra.mxu0 0.0
    %174 = vmatprep.subr.mxu0 0.0
    %175 = vmatpush1.msra.mxu0 0.0
    %176 = vmatprep.subr.mxu0 0.0
    %177 = vmatpush1.msra.mxu0 0.0
    %178 = vmatprep.subr.mxu0 0.0
    %179 = vmatpush1.msra.mxu0 0.0
    %180 = vmatprep.subr.mxu0 0.0
    %181 = vmatpush1.msra.mxu0 0.0
    %182 = vmatprep.subr.mxu0 0.0
    %183 = vmatpush1.msra.mxu0 0.0
    %184 = vmatprep.subr.mxu0 0.0
    %185 = vmatpush1.msra.mxu0 0.0
    %186 = vmatprep.subr.mxu0 0.0
    %187 = vmatpush1.msra.mxu0 0.0
    %188 = vmatprep.subr.mxu0 0.0
    %189 = vmatpush1.msra.mxu0 0.0
    %190 = vmatprep.subr.mxu0 0.0
    %191 = vmatpush1.msra.mxu0 0.0
    %192 = vmatprep.subr.mxu0 0.0
    %193 = vmatpush1.msra.mxu0 0.0
    %194 = vmatprep.subr.mxu0 0.0
    %195 = vmatpush1.msra.mxu0 0.0
    %196 = vmatprep.subr.mxu0 0.0
    %197 = vmatpush1.msra.mxu0 0.0
    %198 = vmatprep.subr.mxu0 0.0
    %199 = vmatpush1.msra.mxu0 0.0
    %200 = vmatprep.subr.mxu0 0.0
    %201 = vmatpush1.msra.mxu0 0.0
    %202 = vmatprep.subr.mxu0 0.0
    %203 = vmatpush1.msra.mxu0 0.0
    %204 = vmatprep.subr.mxu0 0.0
    %205 = vmatpush1.msra.mxu0 0.0
    %206 = vmatprep.subr.mxu0 0.0
    %207 = vmatpush1.msra.mxu0 0.0
    %208 = vmatprep.subr.mxu0 0.0
    %209 = vmatpush1.msra.mxu0 0.0
    %210 = vmatprep.subr.mxu0 0.0
    %211 = vmatpush1.msra.mxu0 0.0
    %212 = vmatprep.subr.mxu0 0.0
    %213 = vmatpush1.msra.mxu0 0.0
    %214 = vmatprep.mubr.f32.mxu0 0.0
    %v215 = vand.u32 %v48, 4294901760
    %216 = vmatmul.mubr.f32.gmra.mrb[0].mxu0 %v215
    %v217 = vpop.f32.mrb[0].mxu0
    %v218 = vadd.f32 %v126, %v217
    %v219 = vpop.f32.mrb[0].mxu0
    %v220 = vadd.f32 %v128, %v219
    %221 = vdwg.mxu0
    %v222 = vand.u32 %v43, 4294901760
    %v223 = vsub.f32 %v43, %v222
    %224 = vmatprep.subr.mxu0 %v223
    %v225 = vand.u32 %v42, 4294901760
    %v226 = vsub.f32 %v42, %v225
    %227 = vmatpush1.msra.mxu0 %v226
    %v228 = vand.u32 %v45, 4294901760
    %v229 = vsub.f32 %v45, %v228
    %230 = vmatprep.subr.mxu0 %v229
    %v231 = vand.u32 %v44, 4294901760
    %v232 = vsub.f32 %v44, %v231
    %233 = vmatpush1.msra.mxu0 %v232
    %234 = vmatprep.subr.mxu0 0.0
    %235 = vmatpush1.msra.mxu0 0.0
    %236 = vmatprep.subr.mxu0 0.0
    %237 = vmatpush1.msra.mxu0 0.0
    %238 = vmatprep.subr.mxu0 0.0
    %239 = vmatpush1.msra.mxu0 0.0
    %240 = vmatprep.subr.mxu0 0.0
    %241 = vmatpush1.msra.mxu0 0.0
    %242 = vmatprep.subr.mxu0 0.0
    %243 = vmatpush1.msra.mxu0 0.0
    %244 = vmatprep.subr.mxu0 0.0
    %245 = vmatpush1.msra.mxu0 0.0
    %246 = vmatprep.subr.mxu0 0.0
    %247 = vmatpush1.msra.mxu0 0.0
    %248 = vmatprep.subr.mxu0 0.0
    %249 = vmatpush1.msra.mxu0 0.0
    %250 = vmatprep.subr.mxu0 0.0
    %251 = vmatpush1.msra.mxu0 0.0
    %252 = vmatprep.subr.mxu0 0.0
    %253 = vmatpush1.msra.mxu0 0.0
    %254 = vmatprep.subr.mxu0 0.0
    %255 = vmatpush1.msra.mxu0 0.0
    %256 = vmatprep.subr.mxu0 0.0
    %257 = vmatpush1.msra.mxu0 0.0
    %258 = vmatprep.subr.mxu0 0.0
    %259 = vmatpush1.msra.mxu0 0.0
    %260 = vmatprep.subr.mxu0 0.0
    %261 = vmatpush1.msra.mxu0 0.0
    %262 = vmatprep.subr.mxu0 0.0
    %263 = vmatpush1.msra.mxu0 0.0
    %264 = vmatprep.subr.mxu0 0.0
    %265 = vmatpush1.msra.mxu0 0.0
    %266 = vmatprep.subr.mxu0 0.0
    %267 = vmatpush1.msra.mxu0 0.0
    %268 = vmatprep.subr.mxu0 0.0
    %269 = vmatpush1.msra.mxu0 0.0
    %270 = vmatprep.subr.mxu0 0.0
    %271 = vmatpush1.msra.mxu0 0.0
    %272 = vmatprep.subr.mxu0 0.0
    %273 = vmatpush1.msra.mxu0 0.0
    %274 = vmatprep.subr.mxu0 0.0
    %275 = vmatpush1.msra.mxu0 0.0
    %276 = vmatprep.subr.mxu0 0.0
    %277 = vmatpush1.msra.mxu0 0.0
    %278 = vmatprep.subr.mxu0 0.0
    %279 = vmatpush1.msra.mxu0 0.0
    %280 = vmatprep.subr.mxu0 0.0
    %281 = vmatpush1.msra.mxu0 0.0
    %282 = vmatprep.subr.mxu0 0.0
    %283 = vmatpush1.msra.mxu0 0.0
    %284 = vmatprep.subr.mxu0 0.0
    %285 = vmatpush1.msra.mxu0 0.0
    %286 = vmatprep.subr.mxu0 0.0
    %287 = vmatpush1.msra.mxu0 0.0
    %288 = vmatprep.subr.mxu0 0.0
    %289 = vmatpush1.msra.mxu0 0.0
    %290 = vmatprep.subr.mxu0 0.0
    %291 = vmatpush1.msra.mxu0 0.0
    %292 = vmatprep.subr.mxu0 0.0
    %293 = vmatpush1.msra.mxu0 0.0
    %294 = vmatprep.mubr.f32.mxu0 0.0
    %v295 = vand.u32 %v48, 4294901760
    %v296 = vsub.f32 %v48, %v295
    %297 = vmatmul.mubr.f32.gmra.mrb[0].mxu0 %v296
    %v298 = vpop.f32.mrb[0].mxu0
    %v299 = vadd.f32 %v218, %v298
    %v300 = vpop.f32.mrb[0].mxu0
    %v301 = vadd.f32 %v220, %v300
    %302 = vdwg.mxu0
    %v303 = vand.u32 %v43, 4294901760
    %304 = vmatprep.subr.mxu0 %v303
    %v305 = vand.u32 %v42, 4294901760
    %306 = vmatpush1.msra.mxu0 %v305
    %v307 = vand.u32 %v45, 4294901760
    %308 = vmatprep.subr.mxu0 %v307
    %v309 = vand.u32 %v44, 4294901760
    %310 = vmatpush1.msra.mxu0 %v309
    %311 = vmatprep.subr.mxu0 0.0
    %312 = vmatpush1.msra.mxu0 0.0
    %313 = vmatprep.subr.mxu0 0.0
    %314 = vmatpush1.msra.mxu0 0.0
    %315 = vmatprep.subr.mxu0 0.0
    %316 = vmatpush1.msra.mxu0 0.0
    %317 = vmatprep.subr.mxu0 0.0
    %318 = vmatpush1.msra.mxu0 0.0
    %319 = vmatprep.subr.mxu0 0.0
    %320 = vmatpush1.msra.mxu0 0.0
    %321 = vmatprep.subr.mxu0 0.0
    %322 = vmatpush1.msra.mxu0 0.0
    %323 = vmatprep.subr.mxu0 0.0
    %324 = vmatpush1.msra.mxu0 0.0
    %325 = vmatprep.subr.mxu0 0.0
    %326 = vmatpush1.msra.mxu0 0.0
    %327 = vmatprep.subr.mxu0 0.0
    %328 = vmatpush1.msra.mxu0 0.0
    %329 = vmatprep.subr.mxu0 0.0
    %330 = vmatpush1.msra.mxu0 0.0
    %331 = vmatprep.subr.mxu0 0.0
    %332 = vmatpush1.msra.mxu0 0.0
    %333 = vmatprep.subr.mxu0 0.0
    %334 = vmatpush1.msra.mxu0 0.0
    %335 = vmatprep.subr.mxu0 0.0
    %336 = vmatpush1.msra.mxu0 0.0
    %337 = vmatprep.subr.mxu0 0.0
    %338 = vmatpush1.msra.mxu0 0.0
    %339 = vmatprep.subr.mxu0 0.0
    %340 = vmatpush1.msra.mxu0 0.0
    %341 = vmatprep.subr.mxu0 0.0
    %342 = vmatpush1.msra.mxu0 0.0
    %343 = vmatprep.subr.mxu0 0.0
    %344 = vmatpush1.msra.mxu0 0.0
    %345 = vmatprep.subr.mxu0 0.0
    %346 = vmatpush1.msra.mxu0 0.0
    %347 = vmatprep.subr.mxu0 0.0
    %348 = vmatpush1.msra.mxu0 0.0
    %349 = vmatprep.subr.mxu0 0.0
    %350 = vmatpush1.msra.mxu0 0.0
    %351 = vmatprep.subr.mxu0 0.0
    %352 = vmatpush1.msra.mxu0 0.0
    %353 = vmatprep.subr.mxu0 0.0
    %354 = vmatpush1.msra.mxu0 0.0
    %355 = vmatprep.subr.mxu0 0.0
    %356 = vmatpush1.msra.mxu0 0.0
    %357 = vmatprep.subr.mxu0 0.0
    %358 = vmatpush1.msra.mxu0 0.0
    %359 = vmatprep.subr.mxu0 0.0
    %360 = vmatpush1.msra.mxu0 0.0
    %361 = vmatprep.subr.mxu0 0.0
    %362 = vmatpush1.msra.mxu0 0.0
    %363 = vmatprep.subr.mxu0 0.0
    %364 = vmatpush1.msra.mxu0 0.0
    %365 = vmatprep.subr.mxu0 0.0
    %366 = vmatpush1.msra.mxu0 0.0
    %367 = vmatprep.subr.mxu0 0.0
    %368 = vmatpush1.msra.mxu0 0.0
    %369 = vmatprep.subr.mxu0 0.0
    %370 = vmatpush1.msra.mxu0 0.0
    %371 = vmatprep.mubr.f32.mxu0 0.0
    %v372 = vand.u32 %v48, 4294901760
    %v373 = vsub.f32 %v48, %v372
    %v374 = vand.u32 %v373, 4294901760
    %375 = vmatmul.mubr.f32.gmra.mrb[0].mxu0 %v374
    %v376 = vpop.f32.mrb[0].mxu0
    %v377 = vadd.f32 %v299, %v376
    %v378 = vpop.f32.mrb[0].mxu0
    %v379 = vadd.f32 %v301, %v378
    %380 = vdwg.mxu0
    %v381 = vand.u32 %v43, 4294901760
    %v382 = vsub.f32 %v43, %v381
    %v383 = vand.u32 %v382, 4294901760
    %384 = vmatprep.subr.mxu0 %v383
    %v385 = vand.u32 %v42, 4294901760
    %v386 = vsub.f32 %v42, %v385
    %v387 = vand.u32 %v386, 4294901760
    %388 = vmatpush1.msra.mxu0 %v387
    %v389 = vand.u32 %v45, 4294901760
    %v390 = vsub.f32 %v45, %v389
    %v391 = vand.u32 %v390, 4294901760
    %392 = vmatprep.subr.mxu0 %v391
    %v393 = vand.u32 %v44, 4294901760
    %v394 = vsub.f32 %v44, %v393
    %v395 = vand.u32 %v394, 4294901760
    %396 = vmatpush1.msra.mxu0 %v395
    %397 = vmatprep.subr.mxu0 0.0
    %398 = vmatpush1.msra.mxu0 0.0
    %399 = vmatprep.subr.mxu0 0.0
    %400 = vmatpush1.msra.mxu0 0.0
    %401 = vmatprep.subr.mxu0 0.0
    %402 = vmatpush1.msra.mxu0 0.0
    %403 = vmatprep.subr.mxu0 0.0
    %404 = vmatpush1.msra.mxu0 0.0
    %405 = vmatprep.subr.mxu0 0.0
    %406 = vmatpush1.msra.mxu0 0.0
    %407 = vmatprep.subr.mxu0 0.0
    %408 = vmatpush1.msra.mxu0 0.0
    %409 = vmatprep.subr.mxu0 0.0
    %410 = vmatpush1.msra.mxu0 0.0
    %411 = vmatprep.subr.mxu0 0.0
    %412 = vmatpush1.msra.mxu0 0.0
    %413 = vmatprep.subr.mxu0 0.0
    %414 = vmatpush1.msra.mxu0 0.0
    %415 = vmatprep.subr.mxu0 0.0
    %416 = vmatpush1.msra.mxu0 0.0
    %417 = vmatprep.subr.mxu0 0.0
    %418 = vmatpush1.msra.mxu0 0.0
    %419 = vmatprep.subr.mxu0 0.0
    %420 = vmatpush1.msra.mxu0 0.0
    %421 = vmatprep.subr.mxu0 0.0
    %422 = vmatpush1.msra.mxu0 0.0
    %423 = vmatprep.subr.mxu0 0.0
    %424 = vmatpush1.msra.mxu0 0.0
    %425 = vmatprep.subr.mxu0 0.0
    %426 = vmatpush1.msra.mxu0 0.0
    %427 = vmatprep.subr.mxu0 0.0
    %428 = vmatpush1.msra.mxu0 0.0
    %429 = vmatprep.subr.mxu0 0.0
    %430 = vmatpush1.msra.mxu0 0.0
    %431 = vmatprep.subr.mxu0 0.0
    %432 = vmatpush1.msra.mxu0 0.0
    %433 = vmatprep.subr.mxu0 0.0
    %434 = vmatpush1.msra.mxu0 0.0
    %435 = vmatprep.subr.mxu0 0.0
    %436 = vmatpush1.msra.mxu0 0.0
    %437 = vmatprep.subr.mxu0 0.0
    %438 = vmatpush1.msra.mxu0 0.0
    %439 = vmatprep.subr.mxu0 0.0
    %440 = vmatpush1.msra.mxu0 0.0
    %441 = vmatprep.subr.mxu0 0.0
    %442 = vmatpush1.msra.mxu0 0.0
    %443 = vmatprep.subr.mxu0 0.0
    %444 = vmatpush1.msra.mxu0 0.0
    %445 = vmatprep.subr.mxu0 0.0
    %446 = vmatpush1.msra.mxu0 0.0
    %447 = vmatprep.subr.mxu0 0.0
    %448 = vmatpush1.msra.mxu0 0.0
    %449 = vmatprep.subr.mxu0 0.0
    %450 = vmatpush1.msra.mxu0 0.0
    %451 = vmatprep.subr.mxu0 0.0
    %452 = vmatpush1.msra.mxu0 0.0
    %453 = vmatprep.subr.mxu0 0.0
    %454 = vmatpush1.msra.mxu0 0.0
    %455 = vmatprep.subr.mxu0 0.0
    %456 = vmatpush1.msra.mxu0 0.0
    %457 = vmatprep.mubr.f32.mxu0 0.0
    %v458 = vand.u32 %v48, 4294901760
    %459 = vmatmul.mubr.f32.gmra.mrb[0].mxu0 %v458
    %v460 = vpop.f32.mrb[0].mxu0
    %v461 = vadd.f32 %v377, %v460
    %v462 = vpop.f32.mrb[0].mxu0
    %v463 = vadd.f32 %v379, %v462
    %464 = vdwg.mxu0
    %v465 = vand.u32 %v43, 4294901760
    %466 = vmatprep.subr.mxu0 %v465
    %v467 = vand.u32 %v42, 4294901760
    %468 = vmatpush1.msra.mxu0 %v467
    %v469 = vand.u32 %v45, 4294901760
    %470 = vmatprep.subr.mxu0 %v469
    %v471 = vand.u32 %v44, 4294901760
    %472 = vmatpush1.msra.mxu0 %v471
    %473 = vmatprep.subr.mxu0 0.0
    %474 = vmatpush1.msra.mxu0 0.0
    %475 = vmatprep.subr.mxu0 0.0
    %476 = vmatpush1.msra.mxu0 0.0
    %477 = vmatprep.subr.mxu0 0.0
    %478 = vmatpush1.msra.mxu0 0.0
    %479 = vmatprep.subr.mxu0 0.0
    %480 = vmatpush1.msra.mxu0 0.0
    %481 = vmatprep.subr.mxu0 0.0
    %482 = vmatpush1.msra.mxu0 0.0
    %483 = vmatprep.subr.mxu0 0.0
    %484 = vmatpush1.msra.mxu0 0.0
    %485 = vmatprep.subr.mxu0 0.0
    %486 = vmatpush1.msra.mxu0 0.0
    %487 = vmatprep.subr.mxu0 0.0
    %488 = vmatpush1.msra.mxu0 0.0
    %489 = vmatprep.subr.mxu0 0.0
    %490 = vmatpush1.msra.mxu0 0.0
    %491 = vmatprep.subr.mxu0 0.0
    %492 = vmatpush1.msra.mxu0 0.0
    %493 = vmatprep.subr.mxu0 0.0
    %494 = vmatpush1.msra.mxu0 0.0
    %495 = vmatprep.subr.mxu0 0.0
    %496 = vmatpush1.msra.mxu0 0.0
    %497 = vmatprep.subr.mxu0 0.0
    %498 = vmatpush1.msra.mxu0 0.0
    %499 = vmatprep.subr.mxu0 0.0
    %500 = vmatpush1.msra.mxu0 0.0
    %501 = vmatprep.subr.mxu0 0.0
    %502 = vmatpush1.msra.mxu0 0.0
    %503 = vmatprep.subr.mxu0 0.0
    %504 = vmatpush1.msra.mxu0 0.0
    %505 = vmatprep.subr.mxu0 0.0
    %506 = vmatpush1.msra.mxu0 0.0
    %507 = vmatprep.subr.mxu0 0.0
    %508 = vmatpush1.msra.mxu0 0.0
    %509 = vmatprep.subr.mxu0 0.0
    %510 = vmatpush1.msra.mxu0 0.0
    %511 = vmatprep.subr.mxu0 0.0
    %512 = vmatpush1.msra.mxu0 0.0
    %513 = vmatprep.subr.mxu0 0.0
    %514 = vmatpush1.msra.mxu0 0.0
    %515 = vmatprep.subr.mxu0 0.0
    %516 = vmatpush1.msra.mxu0 0.0
    %517 = vmatprep.subr.mxu0 0.0
    %518 = vmatpush1.msra.mxu0 0.0
    %519 = vmatprep.subr.mxu0 0.0
    %520 = vmatpush1.msra.mxu0 0.0
    %521 = vmatprep.subr.mxu0 0.0
    %522 = vmatpush1.msra.mxu0 0.0
    %523 = vmatprep.subr.mxu0 0.0
    %524 = vmatpush1.msra.mxu0 0.0
    %525 = vmatprep.subr.mxu0 0.0
    %526 = vmatpush1.msra.mxu0 0.0
    %527 = vmatprep.subr.mxu0 0.0
    %528 = vmatpush1.msra.mxu0 0.0
    %529 = vmatprep.subr.mxu0 0.0
    %530 = vmatpush1.msra.mxu0 0.0
    %531 = vmatprep.subr.mxu0 0.0
    %532 = vmatpush1.msra.mxu0 0.0
    %533 = vmatprep.mubr.f32.mxu0 0.0
    %v534 = vand.u32 %v48, 4294901760
    %535 = vmatmul.mubr.f32.gmra.mrb[0].mxu0 %v534
    %v536 = vpop.f32.mrb[0].mxu0
    %v537 = vadd.f32 %v461, %v536
    %v538 = vpop.f32.mrb[0].mxu0
    %v539 = vadd.f32 %v463, %v538
    %540 = vdwg.mxu0
    %v541 = vld [vmem:[%s2] sm:$0x3]
    %v543 = vlaneseq
    %v544 = vshrl.u32 %v543, 7
    %v545 = vsub.s32 0, %v544
    %v546 = vrot.slane %v541, %v545
    %v547 = vlaneseq
    %v548 = vshrl.u32 %v547, 7
    %v549 = vsub.s32 1, %v548
    %v550 = vrot.slane %v541, %v549
    %v553 = vsub.f32 %v537, %v546
    %v554 = vsub.f32 %v539, %v550
    %v555 = vand.u32 2147483647, %v553
    %v556 = vand.u32 2147483647, %v554
    %vm557 = vcmp.le.f32.partialorder %v555, 0.375
    %vm558 = vcmp.le.f32.partialorder %v556, 0.375
    %v559 = vsub.f32 1.125, %v555
    %v560 = vsub.f32 1.125, %v556
    %v561 = vmin.f32 %v559, 1.0
    %v562 = vmin.f32 %v560, 1.0
    %v563 = vsel %vm557, %v561, 0.0
    %v564 = vsel %vm558, %v562, 0.0
    %565 = vst [vmem:[#allocation7] sm:$0xff] %v563
    %566 = vst [vmem:[#allocation7 + $0x8] sm:$0xff] %v564
    // Predicated region
    $region22: #{tpu_custom_call.1} parent=1 // pred_check
      _
    $region23: #{tpu_custom_call.1} parent=1 // pred_check_branch
      %568 = sbr.rel (0) target = $region25
    $region24: #{tpu_custom_call.1} parent=1 // pred_region
      %s570 = ssub.s32 256, 256
      %571 = vsyncadd [#allocation4], %s570
      %s573 = sshll.u32 [#allocation7], 4
      %s574 = int_to_ptr.vmem [resolvable:$true] %s573
      %576 = dma.vmem_to_hbm [thread:$0]  %s574, 256, %s3, [#allocation4]
    $region25: #{tpu_custom_call.1} parent=1 // pred_fallthru
      _
    // Predicated region
    $region26: #{tpu_custom_call.1} parent=1 // pred_check
      _
    $region27: #{tpu_custom_call.1} parent=1 // pred_check_branch
      %578 = sbr.rel (0) target = $region29
    $region28: #{tpu_custom_call.1} parent=1 // pred_region
      %579 = dma.done [#allocation4], 256
    $region29: #{tpu_custom_call.1} parent=1 // pred_fallthru
      _
    %580 = vsyncpa [#allocation3], 1
    %581 = vsyncpa [#allocation6], 1
    %582 = vsyncpa [#allocation4], 1

</llo_original>
